<compile_context>
chip_gen: v5e
topology: v5e:2x2
jax: 0.10.0
libtpu: 0.0.40
codegen_flags: <defaults>
</compile_context>

<pallas_src>
import functools
import math
from typing import List, Optional

import jax
import jax.numpy as jnp
from jax.experimental import pallas as pl
from jax.experimental.pallas import tpu as pltpu


def _round_up(v: int, m: int) -> int:
    return ((v + m - 1) // m) * m


def _linear_bias_kernel(x_ref, w_ref, b_ref, o_ref, *, alpha):
    # x_ref: [TM, K]   w_ref: [K, N_pad] (resident)   b_ref: [1, N_pad] (resident)
    acc = jnp.dot(x_ref[...], w_ref[...], preferred_element_type=jnp.float32)
    acc = acc * jnp.float32(alpha) + b_ref[...].astype(jnp.float32)
    o_ref[...] = acc.astype(o_ref.dtype)


def _linear_nobias_kernel(x_ref, w_ref, o_ref, *, alpha):
    acc = jnp.dot(x_ref[...], w_ref[...], preferred_element_type=jnp.float32)
    o_ref[...] = (acc * jnp.float32(alpha)).astype(o_ref.dtype)


class LinearTransformBlock:
    """JAX/Pallas port of the PyTorch LinearTransformBlock."""

    def __init__(self, in_slices: List[int], in_shapes: List[int], weight,
                 alpha: float, bias=None, tile_m: Optional[int] = None):
        self.start, self.stop = in_slices[:2]
        self.step = in_slices[2] or 1
        self.in_shapes = list(in_shapes)          # trailing dims after the batch dim
        self.alpha = float(alpha)
        self.tile_m = tile_m                      # optional manual override

        out_features, in_features = weight.shape
        self.out_features = int(out_features)
        self.in_features = int(in_features)

        # Lane-dense output: pad N up to a multiple of 128 once, statically.
        self.n_pad = _round_up(self.out_features, 128)
        w_t = jnp.transpose(weight)               # [K, N] — precomputed once
        if self.n_pad != self.out_features:
            w_t = jnp.pad(w_t, ((0, 0), (0, self.n_pad - self.out_features)))
        self.wT_pad = w_t                         # [K, N_pad]

        if bias is not None:
            b = jnp.reshape(bias, (1, self.out_features))
            if self.n_pad != self.out_features:
                b = jnp.pad(b, ((0, 0), (0, self.n_pad - self.out_features)))
            self.bias_pad = b                     # [1, N_pad]
        else:
            self.bias_pad = None

    def _pick_tile_m(self, M: int, K: int, bytes_per_el: int) -> int:
        if self.tile_m is not None:
            return int(self.tile_m)
        n_pad = self.n_pad
        # Double-buffered x/out tiles + (conservatively double-buffered) weight/bias.
        fixed = 2 * (K * n_pad + n_pad) * bytes_per_el
        per_row = 2 * (K + n_pad) * bytes_per_el
        budget = 20 * 1024 * 1024                 # safe on v5e/v6e and v7x's 64 MiB VMEM
        tm = max(8, min(512, (budget - fixed) // max(per_row, 1)))
        tm = (int(tm) // 8) * 8                   # sublane alignment
        tm = max(8, min(tm, _round_up(M, 8)))
        return tm

    def __call__(self, x):
        # ---- glue: slice + reshape (matches x[:, start:stop:step].view([-1]+in_shapes)) ----
        # TODO(synk): the strided column slice still materializes a copy in XLA before the
        # kernel; fusing it into the x BlockSpec (pl.Element offsets / allow_input_fusion)
        # would save one HBM round-trip of the activations for step==1.
        x_sl = x[:, self.start:self.stop:self.step]
        x_r = x_sl.reshape([-1] + self.in_shapes)          # [B, ..., K]
        lead_shape = x_r.shape[:-1]
        K = x_r.shape[-1]
        assert K == self.in_features
        M = int(math.prod(lead_shape))
        x2d = x_r.reshape(M, K)

        n_pad = self.n_pad
        bytes_per_el = jnp.dtype(x.dtype).itemsize
        tm = self._pick_tile_m(M, K, bytes_per_el)
        m_pad = _round_up(M, tm)
        if m_pad != M:
            x2d = jnp.pad(x2d, ((0, m_pad - M), (0, 0)))
        grid = (m_pad // tm,)

        cost = pl.CostEstimate(
            flops=2 * m_pad * K * n_pad,
            transcendentals=0,
            bytes_accessed=(m_pad * K + K * n_pad + m_pad * n_pad + n_pad) * bytes_per_el,
        )
        cparams = pltpu.CompilerParams(
            dimension_semantics=("parallel",),     # shard M across v7x's 2 TensorCores
            vmem_limit_bytes=32 * 1024 * 1024,     # above v5e's 16 MiB scoped default
        )

        x_spec = pl.BlockSpec((tm, K), lambda i: (i, 0))
        w_spec = pl.BlockSpec((K, n_pad), lambda i: (0, 0))      # weight stays resident
        o_spec = pl.BlockSpec((tm, n_pad), lambda i: (i, 0))
        out_shape = jax.ShapeDtypeStruct((m_pad, n_pad), x.dtype)
        w_in = self.wT_pad.astype(x.dtype)

        if self.bias_pad is not None:
            b_spec = pl.BlockSpec((1, n_pad), lambda i: (0, 0))  # bias stays resident
            y_pad = pl.pallas_call(
                functools.partial(_linear_bias_kernel, alpha=self.alpha),
                out_shape=out_shape,
                grid=grid,
                in_specs=[x_spec, w_spec, b_spec],
                out_specs=o_spec,
                compiler_params=cparams,
                cost_estimate=cost,
            )(x2d, w_in, self.bias_pad)
        else:
            y_pad = pl.pallas_call(
                functools.partial(_linear_nobias_kernel, alpha=self.alpha),
                out_shape=out_shape,
                grid=grid,
                in_specs=[x_spec, w_spec],
                out_specs=o_spec,
                compiler_params=cparams,
                cost_estimate=cost,
            )(x2d, w_in)

        y2d = y_pad[:M, :self.out_features]
        return y2d.reshape(*lead_shape, self.out_features)


if __name__ == "__main__":
    key = jax.random.PRNGKey(0)
    k_x1, k_w1, k_b1, k_x2, k_w2 = jax.random.split(key, 5)

    # ---- Test 1: with bias, single grid step -----------------------------------------
    #   x: [batch=8, total_features=64]; slice [16:64] -> 48 cols viewed as [3, 16]
    #   weight: [32, 16], alpha = 1/sqrt(16), bias: [32]
    batch1, total1 = 8, 64
    in_slices1 = [16, 64, 1]
    in_shapes1 = [3, 16]
    out1, k1 = 32, 16
    alpha1 = 1.0 / math.sqrt(k1)

    x1 = jax.random.normal(k_x1, (batch1, total1), dtype=jnp.float32)
    w1 = jax.random.normal(k_w1, (out1, k1), dtype=jnp.float32)
    b1 = jax.random.normal(k_b1, (out1,), dtype=jnp.float32)

    blk1 = LinearTransformBlock(in_slices1, in_shapes1, w1, alpha1, bias=b1)
    y1 = jax.block_until_ready(blk1(x1))

    x1_sl = x1[:, in_slices1[0]:in_slices1[1]:in_slices1[2]].reshape([-1] + in_shapes1)
    y1_ref = jnp.einsum("bpk,ok->bpo", x1_sl, w1 * alpha1,
                        precision=jax.lax.Precision.HIGHEST) + b1
    assert y1.shape == (batch1, in_shapes1[0], out1)
    assert jnp.allclose(y1, y1_ref, atol=1e-4, rtol=1e-4)

    # ---- Test 2: no bias, multiple grid steps + M/N padding ---------------------------
    #   x: [batch=32, total_features=80]; slice [0:64] -> 64 cols viewed as [4, 16]
    #   weight: [48, 16]; tile_m=48 forces M padding (128 -> 144) and a 3-step grid.
    batch2, total2 = 32, 80
    in_slices2 = [0, 64, 1]
    in_shapes2 = [4, 16]
    out2, k2 = 48, 16
    alpha2 = 0.5

    x2 = jax.random.normal(k_x2, (batch2, total2), dtype=jnp.float32)
    w2 = jax.random.normal(k_w2, (out2, k2), dtype=jnp.float32)

    blk2 = LinearTransformBlock(in_slices2, in_shapes2, w2, alpha2, bias=None, tile_m=48)
    y2 = jax.block_until_ready(blk2(x2))

    x2_sl = x2[:, in_slices2[0]:in_slices2[1]:in_slices2[2]].reshape([-1] + in_shapes2)
    y2_ref = jnp.einsum("bpk,ok->bpo", x2_sl, w2 * alpha2,
                        precision=jax.lax.Precision.HIGHEST)
    assert y2.shape == (batch2, in_shapes2[0], out2)
    assert jnp.allclose(y2, y2_ref, atol=1e-4, rtol=1e-4)

    print("KERNEL_OK")
</pallas_src>

<mosaic_0001>
module attributes {stable_mosaic.version = 11 : i64} {
  func.func @_linear_bias_kernel(%arg0: i32, %arg1: memref<24x16xf32, #tpu.memory_space<vmem>>, %arg2: memref<16x128xf32, #tpu.memory_space<vmem>>, %arg3: memref<1x128xf32, #tpu.memory_space<vmem>>, %arg4: memref<24x128xf32, #tpu.memory_space<vmem>>) attributes {dimension_semantics = [#tpu.dimension_semantics<parallel>], iteration_bounds = array<i64: 1>, scalar_prefetch = 0 : i64, scratch_operands = 0 : i64, tpu.core_type = #tpu.core_type<tc>, window_params = [{transform_indices = @transform_0, window_bounds = array<i64: 24, 16>}, {pipeline_mode = #tpu.pipeline_mode<synchronous>, transform_indices = @transform_1, window_bounds = array<i64: 16, 128>}, {pipeline_mode = #tpu.pipeline_mode<synchronous>, transform_indices = @transform_2, window_bounds = array<i64: 1, 128>}, {transform_indices = @transform_3, window_bounds = array<i64: 24, 128>}]} {
    %c0 = arith.constant 0 : index
    %c0_0 = arith.constant 0 : index
    %0 = vector.load %arg1[%c0, %c0_0] : memref<24x16xf32, #tpu.memory_space<vmem>>, vector<24x16xf32>
    %c0_1 = arith.constant 0 : index
    %c0_2 = arith.constant 0 : index
    %1 = vector.load %arg2[%c0_1, %c0_2] : memref<16x128xf32, #tpu.memory_space<vmem>>, vector<16x128xf32>
    %cst = arith.constant dense<0.000000e+00> : vector<24x128xf32>
    %2 = tpu.matmul %0, %1, %cst {dimension_numbers = #tpu.dot_dimension_numbers<[1], [0], [0], [1], [0, 0, 1, 1], [], []>} : vector<24x16xf32>, vector<16x128xf32>, vector<24x128xf32> -> vector<24x128xf32>
    %cst_3 = arith.constant 2.500000e-01 : f32
    %3 = vector.broadcast %cst_3 : f32 to vector<24x128xf32>
    %4 = arith.mulf %2, %3 : vector<24x128xf32>
    %c0_4 = arith.constant 0 : index
    %c0_5 = arith.constant 0 : index
    %5 = vector.load %arg3[%c0_4, %c0_5] : memref<1x128xf32, #tpu.memory_space<vmem>>, vector<1x128xf32>
    %6 = vector.broadcast %5 : vector<1x128xf32> to vector<24x128xf32>
    %7 = arith.addf %4, %6 : vector<24x128xf32>
    %c0_6 = arith.constant 0 : index
    %c0_7 = arith.constant 0 : index
    %8 = vector.load %arg4[%c0_6, %c0_7] : memref<24x128xf32, #tpu.memory_space<vmem>>, vector<24x128xf32>
    tpu.vector_store %arg4[%c0_6, %c0_7], %7 {strides = array<i32>} : memref<24x128xf32, #tpu.memory_space<vmem>>, vector<24x128xf32>,
    return
  }
  func.func @transform_0(%arg0: i32) -> (i32, i32) {
    %c0_i32 = arith.constant 0 : i32
    %c0_i32_0 = arith.constant 0 : i32
    return %arg0, %c0_i32 : i32, i32
  }
  func.func @transform_1(%arg0: i32) -> (i32, i32) {
    %c0_i32 = arith.constant 0 : i32
    %c0_i32_0 = arith.constant 0 : i32
    %c0_i32_1 = arith.constant 0 : i32
    return %c0_i32, %c0_i32_0 : i32, i32
  }
  func.func @transform_2(%arg0: i32) -> (i32, i32) {
    %c0_i32 = arith.constant 0 : i32
    %c0_i32_0 = arith.constant 0 : i32
    %c0_i32_1 = arith.constant 0 : i32
    return %c0_i32, %c0_i32_0 : i32, i32
  }
  func.func @transform_3(%arg0: i32) -> (i32, i32) {
    %c0_i32 = arith.constant 0 : i32
    %c0_i32_0 = arith.constant 0 : i32
    return %arg0, %c0_i32 : i32, i32
  }
}

</mosaic_0001>

<llo_original>
// kernel: tpu_custom_call.1
$region0: #{tpu_custom_call.1}
  #allocation0 [shape = 'u32[]', space=smem, size = 0x4, offset = 0x4, fixed_abs, tag = 'smem constant byte address 0x4 - core index']
  #allocation1 [shape = 'u32[72,128]{1,0:T(1,128)}', space=vmem, size = 0x9000, scoped, tag = 'internal scratch']
  %s0 = inlined_call_operand.vmem [shape: f32[24,16], index: 0, kind: input, shape index: {}]
  %s1 = inlined_call_operand.vmem [shape: f32[16,128], index: 1, kind: input, shape index: {}]
  %s2 = inlined_call_operand.vmem [shape: f32[1,128], index: 2, kind: input, shape index: {}]
  %s3 = inlined_call_operand.hbm [shape: f32[24,128], index: 3, kind: output, shape index: {}]
  %s4 = sld [smem:[#allocation0]]
  $region22: #{tpu_custom_call.1} parent=0
    _
  %s6 = ssub.s32 1, %s4
  %s7 = scalar_select 0, %s6, %s4
  $region1: #{tpu_custom_call.1} parent=0
    #allocation2 [shape = 'u8[12288]{0}', space=vmem, size = 0x3000, scoped, tag = 'output window, operand 0, single buffered']
    #allocation3 [shape = 's32[1]{0}', space=sflag, size = 0x4, scoped, tag = 'scoped memory for tpu_custom_call.1']
    %8 = vsyncpa [#allocation3], 0
    // Predicated region
    $region2: #{tpu_custom_call.1} parent=1 // pred_check
      _
    $region3: #{tpu_custom_call.1} parent=1 // pred_check_branch
      %10 = sbr.rel (0) target = $region5
    $region4: #{tpu_custom_call.1} parent=1 // pred_region
      _
    $region5: #{tpu_custom_call.1} parent=1 // pred_fallthru
      _
    // Predicated region
    $region6: #{tpu_custom_call.1} parent=1 // pred_check
      _
    $region7: #{tpu_custom_call.1} parent=1 // pred_check_branch
      %12 = sbr.rel (0) target = $region9
    $region8: #{tpu_custom_call.1} parent=1 // pred_region
      _
    $region9: #{tpu_custom_call.1} parent=1 // pred_fallthru
      _
    // Predicated region
    $region10: #{tpu_custom_call.1} parent=1 // pred_check
      _
    $region11: #{tpu_custom_call.1} parent=1 // pred_check_branch
      %14 = sbr.rel (0) target = $region13
    $region12: #{tpu_custom_call.1} parent=1 // pred_region
      _
    $region13: #{tpu_custom_call.1} parent=1 // pred_fallthru
      _
    %v15 = vld [vmem:[%s0] sm:$0xff]
    %v16 = vld [vmem:[%s0 + $0x8] sm:$0xff]
    %v17 = vld [vmem:[%s0 + $0x10] sm:$0xff]
    %v18 = vld [vmem:[%s1] sm:$0xff]
    %v19 = vld [vmem:[%s1 + $0x8] sm:$0xff]
    %vm20 = vcmask 130048
    %v22 = vsel %vm20, %v15, 0
    %v25 = vsel %vm20, %v16, 0
    %v28 = vsel %vm20, %v17, 0
    %30 = vmatpush.msra.mxu0 0.0
    %31 = vmatpush.msra.mxu0 0.0
    %32 = vmatpush.msra.mxu0 0.0
    %33 = vmatpush.msra.mxu0 0.0
    %34 = vmatpush.msra.mxu0 0.0
    %35 = vmatpush.msra.mxu0 0.0
    %36 = vmatpush.msra.mxu0 0.0
    %37 = vmatpush.msra.mxu0 0.0
    %38 = vmatpush.msra.mxu0 0.0
    %39 = vmatpush.msra.mxu0 0.0
    %40 = vmatpush.msra.mxu0 0.0
    %41 = vmatpush.msra.mxu0 0.0
    %42 = vmatpush.msra.mxu0 0.0
    %43 = vmatpush.msra.mxu0 0.0
    %44 = vmatpush.msra.mxu0 %v19
    %45 = vmatpush.msra.mxu0 %v18
    %46 = vmatmul.f32.gmra.mxu0 %v22
    %v47 = vpop.f32.mrf.mxu0
    %v48 = vadd.f32 0.0, %v47
    %49 = vmatmul.f32.gmra.mxu0 %v25
    %v50 = vpop.f32.mrf.mxu0
    %v51 = vadd.f32 0.0, %v50
    %52 = vmatmul.f32.gmra.mxu0 %v28
    %v53 = vpop.f32.mrf.mxu0
    %v54 = vadd.f32 0.0, %v53
    %55 = vdwg.mxu0
    %v56 = vmul.f32 %v48, 0.25
    %v57 = vmul.f32 %v51, 0.25
    %v58 = vmul.f32 %v54, 0.25
    %v59 = vld [vmem:[%s2] sm:$0x1]
    %v61 = vperm.slane %v59, 0
    %v63 = vadd.f32 %v56, %v61
    %v64 = vadd.f32 %v57, %v61
    %v65 = vadd.f32 %v58, %v61
    %66 = vst [vmem:[#allocation2] sm:$0xff] %v63
    %67 = vst [vmem:[#allocation2 + $0x8] sm:$0xff] %v64
    %68 = vst [vmem:[#allocation2 + $0x10] sm:$0xff] %v65
    // Predicated region
    $region14: #{tpu_custom_call.1} parent=1 // pred_check
      _
    $region15: #{tpu_custom_call.1} parent=1 // pred_check_branch
      %70 = sbr.rel (0) target = $region17
    $region16: #{tpu_custom_call.1} parent=1 // pred_region
      %72 = vsyncadd [#allocation3], 0
      %s73 = sshll.u32 [#allocation2], 4
      %s74 = int_to_ptr.vmem [resolvable:$true] %s73
      %s75 = sshll.u32 %s3, 4
      %s76 = int_to_ptr.hbm [resolvable:$true] %s75
      %81 = dma.vmem_to_hbm [thread:$0]  %s74, 384, %s76, [#allocation3], 128, 128, 8
    $region17: #{tpu_custom_call.1} parent=1 // pred_fallthru
      _
    // Predicated region
    $region18: #{tpu_custom_call.1} parent=1 // pred_check
      _
    $region19: #{tpu_custom_call.1} parent=1 // pred_check_branch
      %83 = sbr.rel (0) target = $region21
    $region20: #{tpu_custom_call.1} parent=1 // pred_region
      %85 = dma.done [#allocation3], 384
    $region21: #{tpu_custom_call.1} parent=1 // pred_fallthru
      _
    %86 = vsyncpa [#allocation3], 1

</llo_original>
